<compile_context>
chip_gen: v7x
topology: tpu7x:2x2x1
jax: 0.10.0
libtpu: 0.0.40
codegen_flags: <defaults>
</compile_context>

<pallas_src>
import numpy as np
import jax
import jax.numpy as jnp
from jax.experimental import pallas as pl
from jax.experimental.pallas import tpu as pltpu

IMG_SIZE = 224.0
ALPHA_2D = 1.0
ALPHA_3D = 100.0
INVALID_Z = 32001.0
TIP_IDX = (4, 8, 12, 16, 20)        # fingertip joints inside the 21-joint set

# Concatenated-input lane layout (wrapper packs one (B, 130) array):
_P2D_OFF = 0      # x2d_pred[:, -1, :42]           (42 lanes, xy interleaved)
_T2D_OFF = 42     # joint_2d_target[:, -1] flat    (10 lanes, xy interleaved)
_P3D_OFF = 52     # x3d_pred[:, -1, :63]           (63 lanes, xyz interleaved)
_T3D_OFF = 115    # joint_3d_target[:, -1] flat    (15 lanes, xyz interleaved)
IN_LANES = 130

# Gather (selection-matmul) output column layout: (B, 40)
#   0:5  d2x = p2x - t2x        5:10  d2y = p2y - t2y
#  10:15 px    15:20 py   20:25 pz
#  25:30 tx    30:35 ty   35:40 tz
GATHER_COLS = 40

# Output slab lane layout (one lane-dense (B, 128) f32 store):
OUT_LANES = 128
_DIST2D_LO = 0        # lanes 0:5   -> euclidean_dist_2d
_DIST3D_LO = 5        # lanes 5:10  -> euclidean_dist_3d
_LANE_L2D = 10        # lane 10     -> loss_2d
_LANE_L3D = 11        # lane 11     -> loss_3d
_LANE_TOTAL = 12      # lane 12     -> total loss


def _build_selection_matrix():
    """Block-diagonal one-hot / +-1 gather matrix (trace-time constant)."""
    sel = np.zeros((IN_LANES, GATHER_COLS), np.float32)
    for i, j in enumerate(TIP_IDX):
        # 2D fingertip diffs (pred - targ), x then y.
        sel[_P2D_OFF + 2 * j, i] = 1.0
        sel[_T2D_OFF + 2 * i, i] = -1.0
        sel[_P2D_OFF + 2 * j + 1, 5 + i] = 1.0
        sel[_T2D_OFF + 2 * i + 1, 5 + i] = -1.0
        # 3D fingertip predictions (x, y, z planes).
        sel[_P3D_OFF + 3 * j + 0, 10 + i] = 1.0
        sel[_P3D_OFF + 3 * j + 1, 15 + i] = 1.0
        sel[_P3D_OFF + 3 * j + 2, 20 + i] = 1.0
        # 3D targets (already fingertip-only).
        sel[_T3D_OFF + 3 * i + 0, 25 + i] = 1.0
        sel[_T3D_OFF + 3 * i + 1, 30 + i] = 1.0
        sel[_T3D_OFF + 3 * i + 2, 35 + i] = 1.0
    return sel


_SEL_NP = _build_selection_matrix()


def _sum_all(x):
    """Sum a 2-D array over lanes then sublanes -> (1, 1)."""
    return jnp.sum(jnp.sum(x, axis=1, keepdims=True), axis=0, keepdims=True)


def _dexter_loss_kernel(x_ref, sel_ref, out_ref):
    B = x_ref.shape[0]
    x = x_ref[...].astype(jnp.float32)                      # (B, 130)

    # One MXU pass gathers every fingertip plane AND forms the 2D diffs.
    # HIGHEST precision keeps f32 exact through the MXU so the 32001.0
    # invalid-z sentinel survives the gather bit-exactly.
    g = jnp.dot(x, sel_ref[...], preferred_element_type=jnp.float32,
                precision=jax.lax.Precision.HIGHEST)        # (B, 40)

    d2x, d2y = g[:, 0:5], g[:, 5:10]
    px, py, pz = g[:, 10:15], g[:, 15:20], g[:, 20:25]
    tx, ty, tz = g[:, 25:30], g[:, 30:35], g[:, 35:40]

    # ------------------------------ 2D loss ------------------------------
    loss_2d = (ALPHA_2D / (IMG_SIZE * B)) * _sum_all(jnp.abs(d2x) + jnp.abs(d2y))
    dist2d = jnp.sqrt(d2x * d2x + d2y * d2y)                # (B, 5)

    # ------------------------------ 3D loss ------------------------------
    # Zero TARGETS at invalid joints (reference view-aliasing behaviour:
    # predictions are never zeroed, visibility mask is all-true afterwards).
    invalid = tz == INVALID_Z
    tx = jnp.where(invalid, 0.0, tx)
    ty = jnp.where(invalid, 0.0, ty)
    tz = jnp.where(invalid, 0.0, tz)

    # 10 cross-lane reductions total (down from 18): preds need min/max of
    # every coord (ranges are reused as the diff scale); targets only need
    # min_x (for their own 1/range_x) and the per-coord max.
    p_mnx = jnp.min(px, axis=1, keepdims=True)
    p_mny = jnp.min(py, axis=1, keepdims=True)
    p_mnz = jnp.min(pz, axis=1, keepdims=True)
    p_mxx = jnp.max(px, axis=1, keepdims=True)
    p_mxy = jnp.max(py, axis=1, keepdims=True)
    p_mxz = jnp.max(pz, axis=1, keepdims=True)
    t_mnx = jnp.min(tx, axis=1, keepdims=True)
    t_mxx = jnp.max(tx, axis=1, keepdims=True)
    t_mxy = jnp.max(ty, axis=1, keepdims=True)
    t_mxz = jnp.max(tz, axis=1, keepdims=True)

    rgx, rgy, rgz = p_mxx - p_mnx, p_mxy - p_mny, p_mxz - p_mnz
    # Exact divides (match the reference; no zero-range guard, as in torch).
    inv_p = 1.0 / rgx
    inv_t = 1.0 / (t_mxx - t_mnx)

    # normalize-then-center simplifies to (v - max_v) / range_x.
    dx3 = ((tx - t_mxx) * inv_t - (px - p_mxx) * inv_p) * rgx
    dy3 = ((ty - t_mxy) * inv_t - (py - p_mxy) * inv_p) * rgy
    dz3 = ((tz - t_mxz) * inv_t - (pz - p_mxz) * inv_p) * rgz
    sq3 = dx3 * dx3 + dy3 * dy3 + dz3 * dz3                 # (B, 5)
    loss_3d = (ALPHA_3D / B) * _sum_all(sq3)                # (1, 1)
    dist3d = jnp.sqrt(sq3)

    # --- lane-dense (B,128) slab, built with VPU where-merges, one store ---
    lane = jax.lax.broadcasted_iota(jnp.int32, (B, OUT_LANES), 1)
    slab = jnp.where(lane == _LANE_L2D, loss_2d,
           jnp.where(lane == _LANE_L3D, loss_3d,
           jnp.where(lane == _LANE_TOTAL, loss_2d + loss_3d, 0.0)))
    for i in range(5):
        slab = jnp.where(lane == _DIST2D_LO + i, dist2d[:, i:i + 1], slab)
        slab = jnp.where(lane == _DIST3D_LO + i, dist3d[:, i:i + 1], slab)
    out_ref[...] = slab


@jax.jit
def _forward(x2d_pred, x3d_pred, joint_2d_target, joint_3d_target):
    B = x2d_pred.shape[0]
    # Single packed kernel input (one data DMA); the fingertip gather itself
    # happens in-kernel via the selection matmul.
    x = jnp.concatenate(
        [x2d_pred[:, -1, :42],
         joint_2d_target[:, -1, :, :].reshape(B, 10),
         x3d_pred[:, -1, :63],
         joint_3d_target[:, -1, :, :].reshape(B, 15)],
        axis=-1)                                             # (B, 130)

    vmem = pl.BlockSpec(memory_space=pltpu.MemorySpace.VMEM)
    out = pl.pallas_call(
        _dexter_loss_kernel,
        out_shape=jax.ShapeDtypeStruct((B, OUT_LANES), jnp.float32),
        in_specs=[vmem, vmem],
        out_specs=vmem,
    )(x, jnp.asarray(_SEL_NP))

    dist2d = out[:, _DIST2D_LO:_DIST2D_LO + 5]
    dist3d = out[:, _DIST3D_LO:_DIST3D_LO + 5]
    return (out[0, _LANE_TOTAL], out[0, _LANE_L2D], out[0, _LANE_L3D],
            dist2d, dist3d)


def dexter_obj_loss(epoch, mask, predictions, targets):
    """JAX/Pallas equivalent of DexterObjLoss.forward (pretrain flag ignored,
    ramp-up scale == 1 as in the reference)."""
    x2d_pred, x3d_pred, _camera_param_pred, _theta, _beta = predictions
    joint_2d_target, joint_3d_target, _verts, _cam_t, _ds = targets

    loss, loss_2d, loss_3d, dist2d, dist3d = _forward(
        x2d_pred, x3d_pred, joint_2d_target, joint_3d_target)

    zero = jnp.zeros((), jnp.float32)          # loss_mask / loss_reg / loss_camera
    avg_distance_2d = [dist2d[:, i] for i in range(5)]
    avg_distance_3d = [dist3d[:, i] for i in range(5)]
    return (loss,
            [loss_2d, loss_3d, zero, zero, zero,
             avg_distance_2d, avg_distance_3d])


if __name__ == "__main__":
    key = jax.random.PRNGKey(0)
    B, S = 2, 8
    n_meshes = 778
    k1, k2, k3, k4, k5, k6 = jax.random.split(key, 6)

    # predictions
    x2d_pred = jax.random.uniform(k1, (B, S, 42 + 2 * n_meshes),
                                  jnp.float32) * IMG_SIZE
    x3d_pred = jax.random.normal(k2, (B, S, 63 + 3 * n_meshes), jnp.float32)
    camera_param_pred = jax.random.normal(k3, (B, S, 4), jnp.float32)
    theta = jax.random.normal(k4, (B, S, 45), jnp.float32)
    beta = jax.random.normal(k5, (B, S, 10), jnp.float32)

    # targets
    kk1, kk2, kk3, kk4 = jax.random.split(k6, 4)
    joint_2d_target = jax.random.uniform(kk1, (B, S, 5, 2),
                                         jnp.float32) * IMG_SIZE
    joint_3d_target = jax.random.normal(kk2, (B, S, 5, 3), jnp.float32)
    # Mark one joint invalid to exercise the z == 32001 sentinel path.
    joint_3d_target = joint_3d_target.at[0, -1, 2, 2].set(INVALID_Z)
    verts_3d_target = jax.random.normal(kk3, (B, S, n_meshes, 3), jnp.float32)
    camera_param_target = jax.random.normal(kk4, (B, S, 4), jnp.float32)
    dataset_type = jnp.zeros((B,), jnp.int32)

    predictions = (x2d_pred, x3d_pred, camera_param_pred, theta, beta)
    targets = (joint_2d_target, joint_3d_target, verts_3d_target,
               camera_param_target, dataset_type)

    loss, parts = dexter_obj_loss(0, None, predictions, targets)
    jax.block_until_ready(loss)
    jax.block_until_ready(parts[0])
    jax.block_until_ready(parts[1])
    for a in parts[5] + parts[6]:
        jax.block_until_ready(a)
    print("KERNEL_OK")
</pallas_src>

<mosaic_0001>
module attributes {stable_mosaic.version = 11 : i64} {
  func.func @_dexter_loss_kernel(%arg0: memref<2x130xf32, #tpu.memory_space<vmem>>, %arg1: memref<130x40xf32, #tpu.memory_space<vmem>>, %arg2: memref<2x128xf32, #tpu.memory_space<vmem>>) attributes {dimension_semantics = [], scalar_prefetch = 0 : i64, scratch_operands = 0 : i64, tpu.core_type = #tpu.core_type<tc>} {
    %c0 = arith.constant 0 : index
    %c0_0 = arith.constant 0 : index
    %0 = vector.load %arg0[%c0, %c0_0] : memref<2x130xf32, #tpu.memory_space<vmem>>, vector<2x130xf32>
    %c0_1 = arith.constant 0 : index
    %c0_2 = arith.constant 0 : index
    %1 = vector.load %arg1[%c0_1, %c0_2] : memref<130x40xf32, #tpu.memory_space<vmem>>, vector<130x40xf32>
    %cst = arith.constant dense<0.000000e+00> : vector<2x40xf32>
    %2 = tpu.matmul %0, %1, %cst {dimension_numbers = #tpu.dot_dimension_numbers<[1], [0], [0], [1], [0, 0, 1, 1], [], []>, precision = #tpu.contract_precision<fp32>} : vector<2x130xf32>, vector<130x40xf32>, vector<2x40xf32> -> vector<2x40xf32>
    %3 = vector.extract_strided_slice %2 {offsets = [0, 0], sizes = [2, 5], strides = [1, 1]} : vector<2x40xf32> to vector<2x5xf32>
    %4 = vector.extract_strided_slice %2 {offsets = [0, 5], sizes = [2, 5], strides = [1, 1]} : vector<2x40xf32> to vector<2x5xf32>
    %5 = vector.extract_strided_slice %2 {offsets = [0, 10], sizes = [2, 5], strides = [1, 1]} : vector<2x40xf32> to vector<2x5xf32>
    %6 = vector.extract_strided_slice %2 {offsets = [0, 15], sizes = [2, 5], strides = [1, 1]} : vector<2x40xf32> to vector<2x5xf32>
    %7 = vector.extract_strided_slice %2 {offsets = [0, 20], sizes = [2, 5], strides = [1, 1]} : vector<2x40xf32> to vector<2x5xf32>
    %8 = vector.extract_strided_slice %2 {offsets = [0, 25], sizes = [2, 5], strides = [1, 1]} : vector<2x40xf32> to vector<2x5xf32>
    %9 = vector.extract_strided_slice %2 {offsets = [0, 30], sizes = [2, 5], strides = [1, 1]} : vector<2x40xf32> to vector<2x5xf32>
    %10 = vector.extract_strided_slice %2 {offsets = [0, 35], sizes = [2, 5], strides = [1, 1]} : vector<2x40xf32> to vector<2x5xf32>
    %11 = math.absf %3 : vector<2x5xf32>
    %12 = math.absf %4 : vector<2x5xf32>
    %13 = arith.addf %11, %12 : vector<2x5xf32>
    %cst_3 = arith.constant dense<0.000000e+00> : vector<2xf32>
    %14 = vector.multi_reduction <add>, %13, %cst_3 [1] : vector<2x5xf32> to vector<2xf32>
    %15 = vector.shape_cast %14 : vector<2xf32> to vector<2x1xf32>
    %cst_4 = arith.constant dense<0.000000e+00> : vector<1xf32>
    %16 = vector.multi_reduction <add>, %15, %cst_4 [0] : vector<2x1xf32> to vector<1xf32>
    %17 = vector.shape_cast %16 : vector<1xf32> to vector<1x1xf32>
    %cst_5 = arith.constant 0.00223214296 : f32
    %18 = vector.broadcast %cst_5 : f32 to vector<1x1xf32>
    %19 = arith.mulf %18, %17 : vector<1x1xf32>
    %20 = arith.mulf %3, %3 : vector<2x5xf32>
    %21 = arith.mulf %4, %4 : vector<2x5xf32>
    %22 = arith.addf %20, %21 : vector<2x5xf32>
    %23 = math.sqrt %22 : vector<2x5xf32>
    %cst_6 = arith.constant 3.200100e+04 : f32
    %24 = vector.broadcast %cst_6 : f32 to vector<2x5xf32>
    %25 = arith.cmpf oeq, %10, %24 : vector<2x5xf32>
    %cst_7 = arith.constant 0.000000e+00 : f32
    %26 = vector.broadcast %cst_7 : f32 to vector<2x5xf32>
    %27 = arith.select %25, %26, %8 : vector<2x5xi1>, vector<2x5xf32>
    %cst_8 = arith.constant 0.000000e+00 : f32
    %28 = vector.broadcast %cst_8 : f32 to vector<2x5xf32>
    %29 = arith.select %25, %28, %9 : vector<2x5xi1>, vector<2x5xf32>
    %cst_9 = arith.constant 0.000000e+00 : f32
    %30 = vector.broadcast %cst_9 : f32 to vector<2x5xf32>
    %31 = arith.select %25, %30, %10 : vector<2x5xi1>, vector<2x5xf32>
    %cst_10 = arith.constant dense<0x7F800000> : vector<2xf32>
    %32 = vector.multi_reduction <minimumf>, %5, %cst_10 [1] : vector<2x5xf32> to vector<2xf32>
    %33 = vector.shape_cast %32 : vector<2xf32> to vector<2x1xf32>
    %cst_11 = arith.constant dense<0x7F800000> : vector<2xf32>
    %34 = vector.multi_reduction <minimumf>, %6, %cst_11 [1] : vector<2x5xf32> to vector<2xf32>
    %35 = vector.shape_cast %34 : vector<2xf32> to vector<2x1xf32>
    %cst_12 = arith.constant dense<0x7F800000> : vector<2xf32>
    %36 = vector.multi_reduction <minimumf>, %7, %cst_12 [1] : vector<2x5xf32> to vector<2xf32>
    %37 = vector.shape_cast %36 : vector<2xf32> to vector<2x1xf32>
    %cst_13 = arith.constant dense<0xFF800000> : vector<2xf32>
    %38 = vector.multi_reduction <maximumf>, %5, %cst_13 [1] : vector<2x5xf32> to vector<2xf32>
    %39 = vector.shape_cast %38 : vector<2xf32> to vector<2x1xf32>
    %cst_14 = arith.constant dense<0xFF800000> : vector<2xf32>
    %40 = vector.multi_reduction <maximumf>, %6, %cst_14 [1] : vector<2x5xf32> to vector<2xf32>
    %41 = vector.shape_cast %40 : vector<2xf32> to vector<2x1xf32>
    %cst_15 = arith.constant dense<0xFF800000> : vector<2xf32>
    %42 = vector.multi_reduction <maximumf>, %7, %cst_15 [1] : vector<2x5xf32> to vector<2xf32>
    %43 = vector.shape_cast %42 : vector<2xf32> to vector<2x1xf32>
    %cst_16 = arith.constant dense<0x7F800000> : vector<2xf32>
    %44 = vector.multi_reduction <minimumf>, %27, %cst_16 [1] : vector<2x5xf32> to vector<2xf32>
    %45 = vector.shape_cast %44 : vector<2xf32> to vector<2x1xf32>
    %cst_17 = arith.constant dense<0xFF800000> : vector<2xf32>
    %46 = vector.multi_reduction <maximumf>, %27, %cst_17 [1] : vector<2x5xf32> to vector<2xf32>
    %47 = vector.shape_cast %46 : vector<2xf32> to vector<2x1xf32>
    %cst_18 = arith.constant dense<0xFF800000> : vector<2xf32>
    %48 = vector.multi_reduction <maximumf>, %29, %cst_18 [1] : vector<2x5xf32> to vector<2xf32>
    %49 = vector.shape_cast %48 : vector<2xf32> to vector<2x1xf32>
    %cst_19 = arith.constant dense<0xFF800000> : vector<2xf32>
    %50 = vector.multi_reduction <maximumf>, %31, %cst_19 [1] : vector<2x5xf32> to vector<2xf32>
    %51 = vector.shape_cast %50 : vector<2xf32> to vector<2x1xf32>
    %52 = arith.subf %39, %33 : vector<2x1xf32>
    %53 = arith.subf %41, %35 : vector<2x1xf32>
    %54 = arith.subf %43, %37 : vector<2x1xf32>
    %cst_20 = arith.constant 1.000000e+00 : f32
    %55 = vector.broadcast %cst_20 : f32 to vector<2x1xf32>
    %56 = arith.divf %55, %52 : vector<2x1xf32>
    %57 = arith.subf %47, %45 : vector<2x1xf32>
    %cst_21 = arith.constant 1.000000e+00 : f32
    %58 = vector.broadcast %cst_21 : f32 to vector<2x1xf32>
    %59 = arith.divf %58, %57 : vector<2x1xf32>
    %60 = vector.broadcast %47 : vector<2x1xf32> to vector<2x5xf32>
    %61 = arith.subf %27, %60 : vector<2x5xf32>
    %62 = vector.broadcast %59 : vector<2x1xf32> to vector<2x5xf32>
    %63 = arith.mulf %61, %62 : vector<2x5xf32>
    %64 = vector.broadcast %39 : vector<2x1xf32> to vector<2x5xf32>
    %65 = arith.subf %5, %64 : vector<2x5xf32>
    %66 = vector.broadcast %56 : vector<2x1xf32> to vector<2x5xf32>
    %67 = arith.mulf %65, %66 : vector<2x5xf32>
    %68 = arith.subf %63, %67 : vector<2x5xf32>
    %69 = vector.broadcast %52 : vector<2x1xf32> to vector<2x5xf32>
    %70 = arith.mulf %68, %69 : vector<2x5xf32>
    %71 = vector.broadcast %49 : vector<2x1xf32> to vector<2x5xf32>
    %72 = arith.subf %29, %71 : vector<2x5xf32>
    %73 = vector.broadcast %59 : vector<2x1xf32> to vector<2x5xf32>
    %74 = arith.mulf %72, %73 : vector<2x5xf32>
    %75 = vector.broadcast %41 : vector<2x1xf32> to vector<2x5xf32>
    %76 = arith.subf %6, %75 : vector<2x5xf32>
    %77 = vector.broadcast %56 : vector<2x1xf32> to vector<2x5xf32>
    %78 = arith.mulf %76, %77 : vector<2x5xf32>
    %79 = arith.subf %74, %78 : vector<2x5xf32>
    %80 = vector.broadcast %53 : vector<2x1xf32> to vector<2x5xf32>
    %81 = arith.mulf %79, %80 : vector<2x5xf32>
    %82 = vector.broadcast %51 : vector<2x1xf32> to vector<2x5xf32>
    %83 = arith.subf %31, %82 : vector<2x5xf32>
    %84 = vector.broadcast %59 : vector<2x1xf32> to vector<2x5xf32>
    %85 = arith.mulf %83, %84 : vector<2x5xf32>
    %86 = vector.broadcast %43 : vector<2x1xf32> to vector<2x5xf32>
    %87 = arith.subf %7, %86 : vector<2x5xf32>
    %88 = vector.broadcast %56 : vector<2x1xf32> to vector<2x5xf32>
    %89 = arith.mulf %87, %88 : vector<2x5xf32>
    %90 = arith.subf %85, %89 : vector<2x5xf32>
    %91 = vector.broadcast %54 : vector<2x1xf32> to vector<2x5xf32>
    %92 = arith.mulf %90, %91 : vector<2x5xf32>
    %93 = arith.mulf %70, %70 : vector<2x5xf32>
    %94 = arith.mulf %81, %81 : vector<2x5xf32>
    %95 = arith.addf %93, %94 : vector<2x5xf32>
    %96 = arith.mulf %92, %92 : vector<2x5xf32>
    %97 = arith.addf %95, %96 : vector<2x5xf32>
    %cst_22 = arith.constant dense<0.000000e+00> : vector<2xf32>
    %98 = vector.multi_reduction <add>, %97, %cst_22 [1] : vector<2x5xf32> to vector<2xf32>
    %99 = vector.shape_cast %98 : vector<2xf32> to vector<2x1xf32>
    %cst_23 = arith.constant dense<0.000000e+00> : vector<1xf32>
    %100 = vector.multi_reduction <add>, %99, %cst_23 [0] : vector<2x1xf32> to vector<1xf32>
    %101 = vector.shape_cast %100 : vector<1xf32> to vector<1x1xf32>
    %cst_24 = arith.constant 5.000000e+01 : f32
    %102 = vector.broadcast %cst_24 : f32 to vector<1x1xf32>
    %103 = arith.mulf %102, %101 : vector<1x1xf32>
    %104 = math.sqrt %97 : vector<2x5xf32>
    %105 = tpu.iota {dimensions = array<i32: 1>} : vector<2x128xi32>
    %c10_i32 = arith.constant 10 : i32
    %106 = vector.broadcast %c10_i32 : i32 to vector<2x128xi32>
    %107 = arith.cmpi eq, %105, %106 : vector<2x128xi32>
    %c11_i32 = arith.constant 11 : i32
    %108 = vector.broadcast %c11_i32 : i32 to vector<2x128xi32>
    %109 = arith.cmpi eq, %105, %108 : vector<2x128xi32>
    %c12_i32 = arith.constant 12 : i32
    %110 = vector.broadcast %c12_i32 : i32 to vector<2x128xi32>
    %111 = arith.cmpi eq, %105, %110 : vector<2x128xi32>
    %112 = arith.addf %19, %103 : vector<1x1xf32>
    %cst_25 = arith.constant 0.000000e+00 : f32
    %113 = vector.shape_cast %112 : vector<1x1xf32> to vector<1x1xf32>
    %114 = vector.broadcast %113 : vector<1x1xf32> to vector<2x128xf32>
    %115 = vector.broadcast %cst_25 : f32 to vector<2x128xf32>
    %116 = arith.select %111, %114, %115 : vector<2x128xi1>, vector<2x128xf32>
    %117 = vector.shape_cast %103 : vector<1x1xf32> to vector<1x1xf32>
    %118 = vector.broadcast %117 : vector<1x1xf32> to vector<2x128xf32>
    %119 = arith.select %109, %118, %116 : vector<2x128xi1>, vector<2x128xf32>
    %120 = vector.shape_cast %19 : vector<1x1xf32> to vector<1x1xf32>
    %121 = vector.broadcast %120 : vector<1x1xf32> to vector<2x128xf32>
    %122 = arith.select %107, %121, %119 : vector<2x128xi1>, vector<2x128xf32>
    %c0_i32 = arith.constant 0 : i32
    %123 = vector.broadcast %c0_i32 : i32 to vector<2x128xi32>
    %124 = arith.cmpi eq, %105, %123 : vector<2x128xi32>
    %125 = vector.extract_strided_slice %23 {offsets = [0, 0], sizes = [2, 1], strides = [1, 1]} : vector<2x5xf32> to vector<2x1xf32>
    %126 = vector.shape_cast %125 : vector<2x1xf32> to vector<2x1xf32>
    %127 = vector.broadcast %126 : vector<2x1xf32> to vector<2x128xf32>
    %128 = arith.select %124, %127, %122 : vector<2x128xi1>, vector<2x128xf32>
    %c5_i32 = arith.constant 5 : i32
    %129 = vector.broadcast %c5_i32 : i32 to vector<2x128xi32>
    %130 = arith.cmpi eq, %105, %129 : vector<2x128xi32>
    %131 = vector.extract_strided_slice %104 {offsets = [0, 0], sizes = [2, 1], strides = [1, 1]} : vector<2x5xf32> to vector<2x1xf32>
    %132 = vector.shape_cast %131 : vector<2x1xf32> to vector<2x1xf32>
    %133 = vector.broadcast %132 : vector<2x1xf32> to vector<2x128xf32>
    %134 = arith.select %130, %133, %128 : vector<2x128xi1>, vector<2x128xf32>
    %c1_i32 = arith.constant 1 : i32
    %135 = vector.broadcast %c1_i32 : i32 to vector<2x128xi32>
    %136 = arith.cmpi eq, %105, %135 : vector<2x128xi32>
    %137 = vector.extract_strided_slice %23 {offsets = [0, 1], sizes = [2, 1], strides = [1, 1]} : vector<2x5xf32> to vector<2x1xf32>
    %138 = vector.shape_cast %137 : vector<2x1xf32> to vector<2x1xf32>
    %139 = vector.broadcast %138 : vector<2x1xf32> to vector<2x128xf32>
    %140 = arith.select %136, %139, %134 : vector<2x128xi1>, vector<2x128xf32>
    %c6_i32 = arith.constant 6 : i32
    %141 = vector.broadcast %c6_i32 : i32 to vector<2x128xi32>
    %142 = arith.cmpi eq, %105, %141 : vector<2x128xi32>
    %143 = vector.extract_strided_slice %104 {offsets = [0, 1], sizes = [2, 1], strides = [1, 1]} : vector<2x5xf32> to vector<2x1xf32>
    %144 = vector.shape_cast %143 : vector<2x1xf32> to vector<2x1xf32>
    %145 = vector.broadcast %144 : vector<2x1xf32> to vector<2x128xf32>
    %146 = arith.select %142, %145, %140 : vector<2x128xi1>, vector<2x128xf32>
    %c2_i32 = arith.constant 2 : i32
    %147 = vector.broadcast %c2_i32 : i32 to vector<2x128xi32>
    %148 = arith.cmpi eq, %105, %147 : vector<2x128xi32>
    %149 = vector.extract_strided_slice %23 {offsets = [0, 2], sizes = [2, 1], strides = [1, 1]} : vector<2x5xf32> to vector<2x1xf32>
    %150 = vector.shape_cast %149 : vector<2x1xf32> to vector<2x1xf32>
    %151 = vector.broadcast %150 : vector<2x1xf32> to vector<2x128xf32>
    %152 = arith.select %148, %151, %146 : vector<2x128xi1>, vector<2x128xf32>
    %c7_i32 = arith.constant 7 : i32
    %153 = vector.broadcast %c7_i32 : i32 to vector<2x128xi32>
    %154 = arith.cmpi eq, %105, %153 : vector<2x128xi32>
    %155 = vector.extract_strided_slice %104 {offsets = [0, 2], sizes = [2, 1], strides = [1, 1]} : vector<2x5xf32> to vector<2x1xf32>
    %156 = vector.shape_cast %155 : vector<2x1xf32> to vector<2x1xf32>
    %157 = vector.broadcast %156 : vector<2x1xf32> to vector<2x128xf32>
    %158 = arith.select %154, %157, %152 : vector<2x128xi1>, vector<2x128xf32>
    %c3_i32 = arith.constant 3 : i32
    %159 = vector.broadcast %c3_i32 : i32 to vector<2x128xi32>
    %160 = arith.cmpi eq, %105, %159 : vector<2x128xi32>
    %161 = vector.extract_strided_slice %23 {offsets = [0, 3], sizes = [2, 1], strides = [1, 1]} : vector<2x5xf32> to vector<2x1xf32>
    %162 = vector.shape_cast %161 : vector<2x1xf32> to vector<2x1xf32>
    %163 = vector.broadcast %162 : vector<2x1xf32> to vector<2x128xf32>
    %164 = arith.select %160, %163, %158 : vector<2x128xi1>, vector<2x128xf32>
    %c8_i32 = arith.constant 8 : i32
    %165 = vector.broadcast %c8_i32 : i32 to vector<2x128xi32>
    %166 = arith.cmpi eq, %105, %165 : vector<2x128xi32>
    %167 = vector.extract_strided_slice %104 {offsets = [0, 3], sizes = [2, 1], strides = [1, 1]} : vector<2x5xf32> to vector<2x1xf32>
    %168 = vector.shape_cast %167 : vector<2x1xf32> to vector<2x1xf32>
    %169 = vector.broadcast %168 : vector<2x1xf32> to vector<2x128xf32>
    %170 = arith.select %166, %169, %164 : vector<2x128xi1>, vector<2x128xf32>
    %c4_i32 = arith.constant 4 : i32
    %171 = vector.broadcast %c4_i32 : i32 to vector<2x128xi32>
    %172 = arith.cmpi eq, %105, %171 : vector<2x128xi32>
    %173 = vector.extract_strided_slice %23 {offsets = [0, 4], sizes = [2, 1], strides = [1, 1]} : vector<2x5xf32> to vector<2x1xf32>
    %174 = vector.shape_cast %173 : vector<2x1xf32> to vector<2x1xf32>
    %175 = vector.broadcast %174 : vector<2x1xf32> to vector<2x128xf32>
    %176 = arith.select %172, %175, %170 : vector<2x128xi1>, vector<2x128xf32>
    %c9_i32 = arith.constant 9 : i32
    %177 = vector.broadcast %c9_i32 : i32 to vector<2x128xi32>
    %178 = arith.cmpi eq, %105, %177 : vector<2x128xi32>
    %179 = vector.extract_strided_slice %104 {offsets = [0, 4], sizes = [2, 1], strides = [1, 1]} : vector<2x5xf32> to vector<2x1xf32>
    %180 = vector.shape_cast %179 : vector<2x1xf32> to vector<2x1xf32>
    %181 = vector.broadcast %180 : vector<2x1xf32> to vector<2x128xf32>
    %182 = arith.select %178, %181, %176 : vector<2x128xi1>, vector<2x128xf32>
    %c0_26 = arith.constant 0 : index
    %c0_27 = arith.constant 0 : index
    %183 = vector.load %arg2[%c0_26, %c0_27] : memref<2x128xf32, #tpu.memory_space<vmem>>, vector<2x128xf32>
    tpu.vector_store %arg2[%c0_26, %c0_27], %182 {strides = array<i32>} : memref<2x128xf32, #tpu.memory_space<vmem>>, vector<2x128xf32>,
    return
  }
}

</mosaic_0001>

<llo_original>
// kernel: squeeze.8
$region0: #{squeeze.8}
  %s0 = inlined_call_operand.vmem [shape: f32[2,5,2], index: 0, kind: input, shape index: {}]
  %s1 = inlined_call_operand.vmem [shape: f32[2,10], index: 1, kind: output, shape index: {}]
  $region1: #{squeeze.8} parent=0
    #allocation0 [shape = 'u8[4096]{0}', space=vmem, size = 0x1000, scoped, tag = 'scoped mem for output reshape']
    %s2 = smov 3
    %v3 = vld [vmem:[%s0] ss:$8 sm:%s2]
    %vm4 = vcmask 15360
    %5 = vst.msk [vmem:[#allocation0] sm:$0x3] %vm4, %v3
    %s6 = scalar_lea.vmem %s0, 4
    %s7 = smov 3
    %v8 = vld [vmem:[%s6] ss:$8 sm:%s7]
    %9 = vrot.lane.b32.xlu0 %v8, 8
    %v10 = vpop.permute.xlu0 %9
    %vm11 = vcmask 80960
    %12 = vst.msk [vmem:[#allocation0] sm:$0x3] %vm11, %v10
    %s13 = scalar_lea.vmem %s0, 3
    %s14 = smov 3
    %v15 = vld [vmem:[%s13] ss:$8 sm:%s14]
    %16 = vrot.lane.b32.xlu0 %v15, 6
    %v17 = vpop.permute.xlu0 %16
    %vm18 = vcmask 64560
    %19 = vst.msk [vmem:[#allocation0] sm:$0x3] %vm18, %v17
    %s20 = scalar_lea.vmem %s0, 2
    %s21 = smov 3
    %v22 = vld [vmem:[%s20] ss:$8 sm:%s21]
    %23 = vrot.lane.b32.xlu0 %v22, 4
    %v24 = vpop.permute.xlu0 %23
    %vm25 = vcmask 48160
    %26 = vst.msk [vmem:[#allocation0] sm:$0x3] %vm25, %v24
    %s27 = scalar_lea.vmem %s0, 1
    %s28 = smov 3
    %v29 = vld [vmem:[%s27] ss:$8 sm:%s28]
    %30 = vrot.lane.b32.xlu0 %v29, 2
    %v31 = vpop.permute.xlu0 %30
    %vm32 = vcmask 31760
    %33 = vst.msk [vmem:[#allocation0] sm:$0x3] %vm32, %v31
    %s35 = sshllo.u32 0, 2
    %v37 = vld [vmem:[#allocation0] sm:%s35]
    %s38 = sshllo.u32 0, 2
    %39 = vst [vmem:[%s1] sm:%s38] %v37

// kernel: _forward.1
$region0: #{_forward.1}
  #allocation0 [shape = 'u32[]', space=smem, size = 0x4, offset = 0x4, fixed_abs, tag = 'smem constant byte address 0x4 - core index']
  #allocation1 [shape = 'u32[144,128]{1,0:T(1,128)}', space=vmem, size = 0x12000, scoped, tag = 'internal scratch']
  %s0 = inlined_call_operand.vmem [shape: f32[2,130], index: 0, kind: input, shape index: {}]
  %s1 = inlined_call_operand.vmem [shape: f32[130,40], index: 1, kind: input, shape index: {}]
  %s2 = inlined_call_operand.vmem [shape: f32[2,128], index: 2, kind: output, shape index: {}]
  %s3 = sld [smem:[#allocation0]]
  $region18: #{_forward.1} parent=0
    _
  %s5 = ssub.s32 1, %s3
  %s6 = scalar_select 0, %s5, %s3
  // Predicated region
  $region2: #{_forward.1} parent=0 // pred_check
    _
  $region3: #{_forward.1} parent=0 // pred_check_branch
    %8 = sbr.rel (0) target = $region5
  $region4: #{_forward.1} parent=0 // pred_region
    _
  $region5: #{_forward.1} parent=0 // pred_fallthru
    _
  // Predicated region
  $region6: #{_forward.1} parent=0 // pred_check
    _
  $region7: #{_forward.1} parent=0 // pred_check_branch
    %10 = sbr.rel (0) target = $region9
  $region8: #{_forward.1} parent=0 // pred_region
    _
  $region9: #{_forward.1} parent=0 // pred_fallthru
    _
  %v11 = vld [vmem:[%s0] sm:$0xf]
  %v12 = vld [vmem:[%s1] sm:$0xff]
  %v13 = vld [vmem:[%s1 + $0x8] sm:$0xff]
  %v14 = vld [vmem:[%s1 + $0x10] sm:$0xff]
  %v15 = vld [vmem:[%s1 + $0x18] sm:$0xff]
  %v16 = vld [vmem:[%s1 + $0x20] sm:$0xff]
  %v17 = vld [vmem:[%s1 + $0x28] sm:$0xff]
  %v18 = vld [vmem:[%s1 + $0x30] sm:$0xff]
  %v19 = vld [vmem:[%s1 + $0x38] sm:$0xff]
  %v20 = vld [vmem:[%s1 + $0x40] sm:$0xff]
  %v21 = vld [vmem:[%s1 + $0x48] sm:$0xff]
  %v22 = vld [vmem:[%s1 + $0x50] sm:$0xff]
  %v23 = vld [vmem:[%s1 + $0x58] sm:$0xff]
  %v24 = vld [vmem:[%s1 + $0x60] sm:$0xff]
  %v25 = vld [vmem:[%s1 + $0x68] sm:$0xff]
  %v26 = vld [vmem:[%s1 + $0x70] sm:$0xff]
  %v27 = vld [vmem:[%s1 + $0x78] sm:$0xff]
  %v28 = vld [vmem:[%s1 + $0x80] sm:$0x3]
  %v31 = vunpack.c.l.s4 1983009808
  %v32 = vunpack.c.0.s8 %v31
  %v33 = vlaneseq
  %v34 = vshrl.u32 %v33, 7
  %v35 = vsub.s32 %v32, %v34
  %v36 = vrot.slane %v11, %v35
  %v37 = vcombine.high %v36, %v36
  %vm39 = vcmask 15360
  %v40 = vsel %vm39, %v37, 0
  %vm42 = vcmask 1041408
  %v44 = vsel %vm42, %v28, 0
  %46 = vmatprep.subr.mxu0 0.0
  %v47 = vand.u32 %v12, 4294901760
  %48 = vmatpush1.msra.mxu0 %v47
  %49 = vmatprep.subr.mxu0 0.0
  %v50 = vand.u32 %v13, 4294901760
  %51 = vmatpush1.msra.mxu0 %v50
  %52 = vmatprep.subr.mxu0 0.0
  %v53 = vand.u32 %v14, 4294901760
  %54 = vmatpush1.msra.mxu0 %v53
  %55 = vmatprep.subr.mxu0 0.0
  %v56 = vand.u32 %v15, 4294901760
  %57 = vmatpush1.msra.mxu0 %v56
  %58 = vmatprep.subr.mxu0 0.0
  %v59 = vand.u32 %v16, 4294901760
  %60 = vmatpush1.msra.mxu0 %v59
  %61 = vmatprep.subr.mxu0 0.0
  %v62 = vand.u32 %v17, 4294901760
  %63 = vmatpush1.msra.mxu0 %v62
  %64 = vmatprep.subr.mxu0 0.0
  %v65 = vand.u32 %v18, 4294901760
  %66 = vmatpush1.msra.mxu0 %v65
  %67 = vmatprep.subr.mxu0 0.0
  %v68 = vand.u32 %v19, 4294901760
  %69 = vmatpush1.msra.mxu0 %v68
  %70 = vmatprep.subr.mxu0 0.0
  %v71 = vand.u32 %v20, 4294901760
  %72 = vmatpush1.msra.mxu0 %v71
  %73 = vmatprep.subr.mxu0 0.0
  %v74 = vand.u32 %v21, 4294901760
  %75 = vmatpush1.msra.mxu0 %v74
  %76 = vmatprep.subr.mxu0 0.0
  %v77 = vand.u32 %v22, 4294901760
  %78 = vmatpush1.msra.mxu0 %v77
  %79 = vmatprep.subr.mxu0 0.0
  %v80 = vand.u32 %v23, 4294901760
  %81 = vmatpush1.msra.mxu0 %v80
  %82 = vmatprep.subr.mxu0 0.0
  %v83 = vand.u32 %v24, 4294901760
  %84 = vmatpush1.msra.mxu0 %v83
  %85 = vmatprep.subr.mxu0 0.0
  %v86 = vand.u32 %v25, 4294901760
  %87 = vmatpush1.msra.mxu0 %v86
  %88 = vmatprep.subr.mxu0 0.0
  %v89 = vand.u32 %v26, 4294901760
  %90 = vmatpush1.msra.mxu0 %v89
  %91 = vmatprep.subr.mxu0 0.0
  %v92 = vand.u32 %v27, 4294901760
  %93 = vmatpush1.msra.mxu0 %v92
  %94 = vmatprep.subr.mxu0 0.0
  %v95 = vand.u32 %v44, 4294901760
  %96 = vmatpush1.msra.mxu0 %v95
  %97 = vmatprep.subr.mxu0 0.0
  %98 = vmatpush1.msra.mxu0 0.0
  %99 = vmatprep.subr.mxu0 0.0
  %100 = vmatpush1.msra.mxu0 0.0
  %101 = vmatprep.subr.mxu0 0.0
  %102 = vmatpush1.msra.mxu0 0.0
  %103 = vmatprep.subr.mxu0 0.0
  %104 = vmatpush1.msra.mxu0 0.0
  %105 = vmatprep.subr.mxu0 0.0
  %106 = vmatpush1.msra.mxu0 0.0
  %107 = vmatprep.subr.mxu0 0.0
  %108 = vmatpush1.msra.mxu0 0.0
  %109 = vmatprep.subr.mxu0 0.0
  %110 = vmatpush1.msra.mxu0 0.0
  %111 = vmatprep.subr.mxu0 0.0
  %112 = vmatpush1.msra.mxu0 0.0
  %113 = vmatprep.subr.mxu0 0.0
  %114 = vmatpush1.msra.mxu0 0.0
  %115 = vmatprep.subr.mxu0 0.0
  %116 = vmatpush1.msra.mxu0 0.0
  %117 = vmatprep.subr.mxu0 0.0
  %118 = vmatpush1.msra.mxu0 0.0
  %119 = vmatprep.subr.mxu0 0.0
  %120 = vmatpush1.msra.mxu0 0.0
  %121 = vmatprep.subr.mxu0 0.0
  %122 = vmatpush1.msra.mxu0 0.0
  %123 = vmatprep.subr.mxu0 0.0
  %124 = vmatpush1.msra.mxu0 0.0
  %125 = vmatprep.subr.mxu0 0.0
  %126 = vmatpush1.msra.mxu0 0.0
  %v127 = vand.u32 %v40, 4294901760
  %v128 = vsub.f32 %v40, %v127
  %v129 = vand.u32 %v128, 4294901760
  %v130 = vsub.f32 %v128, %v129
  %v131 = vand.u32 %v130, 4294901760
  %132 = vmatprep.mubr.f32.mxu0 %v131
  %v133 = vand.u32 %v36, 4294901760
  %v134 = vsub.f32 %v36, %v133
  %v135 = vand.u32 %v134, 4294901760
  %v136 = vsub.f32 %v134, %v135
  %v137 = vand.u32 %v136, 4294901760
  %138 = vmatmul.mubr.f32.gmra.mrb[0].mxu0 %v137
  %v139 = vpop.f32.mrb[0].mxu0
  %v140 = vadd.f32 0.0, %v139
  %v141 = vpop.f32.mrb[0].mxu0
  %142 = vdwg.mxu0
  %143 = vmatprep.subr.mxu0 0.0
  %v144 = vand.u32 %v12, 4294901760
  %v145 = vsub.f32 %v12, %v144
  %v146 = vand.u32 %v145, 4294901760
  %v147 = vsub.f32 %v145, %v146
  %v148 = vand.u32 %v147, 4294901760
  %149 = vmatpush1.msra.mxu0 %v148
  %150 = vmatprep.subr.mxu0 0.0
  %v151 = vand.u32 %v13, 4294901760
  %v152 = vsub.f32 %v13, %v151
  %v153 = vand.u32 %v152, 4294901760
  %v154 = vsub.f32 %v152, %v153
  %v155 = vand.u32 %v154, 4294901760
  %156 = vmatpush1.msra.mxu0 %v155
  %157 = vmatprep.subr.mxu0 0.0
  %v158 = vand.u32 %v14, 4294901760
  %v159 = vsub.f32 %v14, %v158
  %v160 = vand.u32 %v159, 4294901760
  %v161 = vsub.f32 %v159, %v160
  %v162 = vand.u32 %v161, 4294901760
  %163 = vmatpush1.msra.mxu0 %v162
  %164 = vmatprep.subr.mxu0 0.0
  %v165 = vand.u32 %v15, 4294901760
  %v166 = vsub.f32 %v15, %v165
  %v167 = vand.u32 %v166, 4294901760
  %v168 = vsub.f32 %v166, %v167
  %v169 = vand.u32 %v168, 4294901760
  %170 = vmatpush1.msra.mxu0 %v169
  %171 = vmatprep.subr.mxu0 0.0
  %v172 = vand.u32 %v16, 4294901760
  %v173 = vsub.f32 %v16, %v172
  %v174 = vand.u32 %v173, 4294901760
  %v175 = vsub.f32 %v173, %v174
  %v176 = vand.u32 %v175, 4294901760
  %177 = vmatpush1.msra.mxu0 %v176
  %178 = vmatprep.subr.mxu0 0.0
  %v179 = vand.u32 %v17, 4294901760
  %v180 = vsub.f32 %v17, %v179
  %v181 = vand.u32 %v180, 4294901760
  %v182 = vsub.f32 %v180, %v181
  %v183 = vand.u32 %v182, 4294901760
  %184 = vmatpush1.msra.mxu0 %v183
  %185 = vmatprep.subr.mxu0 0.0
  %v186 = vand.u32 %v18, 4294901760
  %v187 = vsub.f32 %v18, %v186
  %v188 = vand.u32 %v187, 4294901760
  %v189 = vsub.f32 %v187, %v188
  %v190 = vand.u32 %v189, 4294901760
  %191 = vmatpush1.msra.mxu0 %v190
  %192 = vmatprep.subr.mxu0 0.0
  %v193 = vand.u32 %v19, 4294901760
  %v194 = vsub.f32 %v19, %v193
  %v195 = vand.u32 %v194, 4294901760
  %v196 = vsub.f32 %v194, %v195
  %v197 = vand.u32 %v196, 4294901760
  %198 = vmatpush1.msra.mxu0 %v197
  %199 = vmatprep.subr.mxu0 0.0
  %v200 = vand.u32 %v20, 4294901760
  %v201 = vsub.f32 %v20, %v200
  %v202 = vand.u32 %v201, 4294901760
  %v203 = vsub.f32 %v201, %v202
  %v204 = vand.u32 %v203, 4294901760
  %205 = vmatpush1.msra.mxu0 %v204
  %206 = vmatprep.subr.mxu0 0.0
  %v207 = vand.u32 %v21, 4294901760
  %v208 = vsub.f32 %v21, %v207
  %v209 = vand.u32 %v208, 4294901760
  %v210 = vsub.f32 %v208, %v209
  %v211 = vand.u32 %v210, 4294901760
  %212 = vmatpush1.msra.mxu0 %v211
  %213 = vmatprep.subr.mxu0 0.0
  %v214 = vand.u32 %v22, 4294901760
  %v215 = vsub.f32 %v22, %v214
  %v216 = vand.u32 %v215, 4294901760
  %v217 = vsub.f32 %v215, %v216
  %v218 = vand.u32 %v217, 4294901760
  %219 = vmatpush1.msra.mxu0 %v218
  %220 = vmatprep.subr.mxu0 0.0
  %v221 = vand.u32 %v23, 4294901760
  %v222 = vsub.f32 %v23, %v221
  %v223 = vand.u32 %v222, 4294901760
  %v224 = vsub.f32 %v222, %v223
  %v225 = vand.u32 %v224, 4294901760
  %226 = vmatpush1.msra.mxu0 %v225
  %227 = vmatprep.subr.mxu0 0.0
  %v228 = vand.u32 %v24, 4294901760
  %v229 = vsub.f32 %v24, %v228
  %v230 = vand.u32 %v229, 4294901760
  %v231 = vsub.f32 %v229, %v230
  %v232 = vand.u32 %v231, 4294901760
  %233 = vmatpush1.msra.mxu0 %v232
  %234 = vmatprep.subr.mxu0 0.0
  %v235 = vand.u32 %v25, 4294901760
  %v236 = vsub.f32 %v25, %v235
  %v237 = vand.u32 %v236, 4294901760
  %v238 = vsub.f32 %v236, %v237
  %v239 = vand.u32 %v238, 4294901760
  %240 = vmatpush1.msra.mxu0 %v239
  %241 = vmatprep.subr.mxu0 0.0
  %v242 = vand.u32 %v26, 4294901760
  %v243 = vsub.f32 %v26, %v242
  %v244 = vand.u32 %v243, 4294901760
  %v245 = vsub.f32 %v243, %v244
  %v246 = vand.u32 %v245, 4294901760
  %247 = vmatpush1.msra.mxu0 %v246
  %248 = vmatprep.subr.mxu0 0.0
  %v249 = vand.u32 %v27, 4294901760
  %v250 = vsub.f32 %v27, %v249
  %v251 = vand.u32 %v250, 4294901760
  %v252 = vsub.f32 %v250, %v251
  %v253 = vand.u32 %v252, 4294901760
  %254 = vmatpush1.msra.mxu0 %v253
  %255 = vmatprep.subr.mxu0 0.0
  %v256 = vand.u32 %v44, 4294901760
  %v257 = vsub.f32 %v44, %v256
  %v258 = vand.u32 %v257, 4294901760
  %v259 = vsub.f32 %v257, %v258
  %v260 = vand.u32 %v259, 4294901760
  %261 = vmatpush1.msra.mxu0 %v260
  %262 = vmatprep.subr.mxu0 0.0
  %263 = vmatpush1.msra.mxu0 0.0
  %264 = vmatprep.subr.mxu0 0.0
  %265 = vmatpush1.msra.mxu0 0.0
  %266 = vmatprep.subr.mxu0 0.0
  %267 = vmatpush1.msra.mxu0 0.0
  %268 = vmatprep.subr.mxu0 0.0
  %269 = vmatpush1.msra.mxu0 0.0
  %270 = vmatprep.subr.mxu0 0.0
  %271 = vmatpush1.msra.mxu0 0.0
  %272 = vmatprep.subr.mxu0 0.0
  %273 = vmatpush1.msra.mxu0 0.0
  %274 = vmatprep.subr.mxu0 0.0
  %275 = vmatpush1.msra.mxu0 0.0
  %276 = vmatprep.subr.mxu0 0.0
  %277 = vmatpush1.msra.mxu0 0.0
  %278 = vmatprep.subr.mxu0 0.0
  %279 = vmatpush1.msra.mxu0 0.0
  %280 = vmatprep.subr.mxu0 0.0
  %281 = vmatpush1.msra.mxu0 0.0
  %282 = vmatprep.subr.mxu0 0.0
  %283 = vmatpush1.msra.mxu0 0.0
  %284 = vmatprep.subr.mxu0 0.0
  %285 = vmatpush1.msra.mxu0 0.0
  %286 = vmatprep.subr.mxu0 0.0
  %287 = vmatpush1.msra.mxu0 0.0
  %288 = vmatprep.subr.mxu0 0.0
  %289 = vmatpush1.msra.mxu0 0.0
  %290 = vmatprep.subr.mxu0 0.0
  %291 = vmatpush1.msra.mxu0 0.0
  %v292 = vand.u32 %v40, 4294901760
  %293 = vmatprep.mubr.f32.mxu0 %v292
  %v294 = vand.u32 %v36, 4294901760
  %295 = vmatmul.mubr.f32.gmra.mrb[0].mxu0 %v294
  %v296 = vpop.f32.mrb[0].mxu0
  %v297 = vadd.f32 %v140, %v296
  %v298 = vpop.f32.mrb[0].mxu0
  %299 = vdwg.mxu0
  %300 = vmatprep.subr.mxu0 0.0
  %v301 = vand.u32 %v12, 4294901760
  %v302 = vsub.f32 %v12, %v301
  %303 = vmatpush1.msra.mxu0 %v302
  %304 = vmatprep.subr.mxu0 0.0
  %v305 = vand.u32 %v13, 4294901760
  %v306 = vsub.f32 %v13, %v305
  %307 = vmatpush1.msra.mxu0 %v306
  %308 = vmatprep.subr.mxu0 0.0
  %v309 = vand.u32 %v14, 4294901760
  %v310 = vsub.f32 %v14, %v309
  %311 = vmatpush1.msra.mxu0 %v310
  %312 = vmatprep.subr.mxu0 0.0
  %v313 = vand.u32 %v15, 4294901760
  %v314 = vsub.f32 %v15, %v313
  %315 = vmatpush1.msra.mxu0 %v314
  %316 = vmatprep.subr.mxu0 0.0
  %v317 = vand.u32 %v16, 4294901760
  %v318 = vsub.f32 %v16, %v317
  %319 = vmatpush1.msra.mxu0 %v318
  %320 = vmatprep.subr.mxu0 0.0
  %v321 = vand.u32 %v17, 4294901760
  %v322 = vsub.f32 %v17, %v321
  %323 = vmatpush1.msra.mxu0 %v322
  %324 = vmatprep.subr.mxu0 0.0
  %v325 = vand.u32 %v18, 4294901760
  %v326 = vsub.f32 %v18, %v325
  %327 = vmatpush1.msra.mxu0 %v326
  %328 = vmatprep.subr.mxu0 0.0
  %v329 = vand.u32 %v19, 4294901760
  %v330 = vsub.f32 %v19, %v329
  %331 = vmatpush1.msra.mxu0 %v330
  %332 = vmatprep.subr.mxu0 0.0
  %v333 = vand.u32 %v20, 4294901760
  %v334 = vsub.f32 %v20, %v333
  %335 = vmatpush1.msra.mxu0 %v334
  %336 = vmatprep.subr.mxu0 0.0
  %v337 = vand.u32 %v21, 4294901760
  %v338 = vsub.f32 %v21, %v337
  %339 = vmatpush1.msra.mxu0 %v338
  %340 = vmatprep.subr.mxu0 0.0
  %v341 = vand.u32 %v22, 4294901760
  %v342 = vsub.f32 %v22, %v341
  %343 = vmatpush1.msra.mxu0 %v342
  %344 = vmatprep.subr.mxu0 0.0
  %v345 = vand.u32 %v23, 4294901760
  %v346 = vsub.f32 %v23, %v345
  %347 = vmatpush1.msra.mxu0 %v346
  %348 = vmatprep.subr.mxu0 0.0
  %v349 = vand.u32 %v24, 4294901760
  %v350 = vsub.f32 %v24, %v349
  %351 = vmatpush1.msra.mxu0 %v350
  %352 = vmatprep.subr.mxu0 0.0
  %v353 = vand.u32 %v25, 4294901760
  %v354 = vsub.f32 %v25, %v353
  %355 = vmatpush1.msra.mxu0 %v354
  %356 = vmatprep.subr.mxu0 0.0
  %v357 = vand.u32 %v26, 4294901760
  %v358 = vsub.f32 %v26, %v357
  %359 = vmatpush1.msra.mxu0 %v358
  %360 = vmatprep.subr.mxu0 0.0
  %v361 = vand.u32 %v27, 4294901760
  %v362 = vsub.f32 %v27, %v361
  %363 = vmatpush1.msra.mxu0 %v362
  %364 = vmatprep.subr.mxu0 0.0
  %v365 = vand.u32 %v44, 4294901760
  %v366 = vsub.f32 %v44, %v365
  %367 = vmatpush1.msra.mxu0 %v366
  %368 = vmatprep.subr.mxu0 0.0
  %369 = vmatpush1.msra.mxu0 0.0
  %370 = vmatprep.subr.mxu0 0.0
  %371 = vmatpush1.msra.mxu0 0.0
  %372 = vmatprep.subr.mxu0 0.0
  %373 = vmatpush1.msra.mxu0 0.0
  %374 = vmatprep.subr.mxu0 0.0
  %375 = vmatpush1.msra.mxu0 0.0
  %376 = vmatprep.subr.mxu0 0.0
  %377 = vmatpush1.msra.mxu0 0.0
  %378 = vmatprep.subr.mxu0 0.0
  %379 = vmatpush1.msra.mxu0 0.0
  %380 = vmatprep.subr.mxu0 0.0
  %381 = vmatpush1.msra.mxu0 0.0
  %382 = vmatprep.subr.mxu0 0.0
  %383 = vmatpush1.msra.mxu0 0.0
  %384 = vmatprep.subr.mxu0 0.0
  %385 = vmatpush1.msra.mxu0 0.0
  %386 = vmatprep.subr.mxu0 0.0
  %387 = vmatpush1.msra.mxu0 0.0
  %388 = vmatprep.subr.mxu0 0.0
  %389 = vmatpush1.msra.mxu0 0.0
  %390 = vmatprep.subr.mxu0 0.0
  %391 = vmatpush1.msra.mxu0 0.0
  %392 = vmatprep.subr.mxu0 0.0
  %393 = vmatpush1.msra.mxu0 0.0
  %394 = vmatprep.subr.mxu0 0.0
  %395 = vmatpush1.msra.mxu0 0.0
  %396 = vmatprep.subr.mxu0 0.0
  %397 = vmatpush1.msra.mxu0 0.0
  %v398 = vand.u32 %v40, 4294901760
  %v399 = vsub.f32 %v40, %v398
  %400 = vmatprep.mubr.f32.mxu0 %v399
  %v401 = vand.u32 %v36, 4294901760
  %v402 = vsub.f32 %v36, %v401
  %403 = vmatmul.mubr.f32.gmra.mrb[0].mxu0 %v402
  %v404 = vpop.f32.mrb[0].mxu0
  %v405 = vadd.f32 %v297, %v404
  %v406 = vpop.f32.mrb[0].mxu0
  %407 = vdwg.mxu0
  %408 = vmatprep.subr.mxu0 0.0
  %v409 = vand.u32 %v12, 4294901760
  %410 = vmatpush1.msra.mxu0 %v409
  %411 = vmatprep.subr.mxu0 0.0
  %v412 = vand.u32 %v13, 4294901760
  %413 = vmatpush1.msra.mxu0 %v412
  %414 = vmatprep.subr.mxu0 0.0
  %v415 = vand.u32 %v14, 4294901760
  %416 = vmatpush1.msra.mxu0 %v415
  %417 = vmatprep.subr.mxu0 0.0
  %v418 = vand.u32 %v15, 4294901760
  %419 = vmatpush1.msra.mxu0 %v418
  %420 = vmatprep.subr.mxu0 0.0
  %v421 = vand.u32 %v16, 4294901760
  %422 = vmatpush1.msra.mxu0 %v421
  %423 = vmatprep.subr.mxu0 0.0
  %v424 = vand.u32 %v17, 4294901760
  %425 = vmatpush1.msra.mxu0 %v424
  %426 = vmatprep.subr.mxu0 0.0
  %v427 = vand.u32 %v18, 4294901760
  %428 = vmatpush1.msra.mxu0 %v427
  %429 = vmatprep.subr.mxu0 0.0
  %v430 = vand.u32 %v19, 4294901760
  %431 = vmatpush1.msra.mxu0 %v430
  %432 = vmatprep.subr.mxu0 0.0
  %v433 = vand.u32 %v20, 4294901760
  %434 = vmatpush1.msra.mxu0 %v433
  %435 = vmatprep.subr.mxu0 0.0
  %v436 = vand.u32 %v21, 4294901760
  %437 = vmatpush1.msra.mxu0 %v436
  %438 = vmatprep.subr.mxu0 0.0
  %v439 = vand.u32 %v22, 4294901760
  %440 = vmatpush1.msra.mxu0 %v439
  %441 = vmatprep.subr.mxu0 0.0
  %v442 = vand.u32 %v23, 4294901760
  %443 = vmatpush1.msra.mxu0 %v442
  %444 = vmatprep.subr.mxu0 0.0
  %v445 = vand.u32 %v24, 4294901760
  %446 = vmatpush1.msra.mxu0 %v445
  %447 = vmatprep.subr.mxu0 0.0
  %v448 = vand.u32 %v25, 4294901760
  %449 = vmatpush1.msra.mxu0 %v448
  %450 = vmatprep.subr.mxu0 0.0
  %v451 = vand.u32 %v26, 4294901760
  %452 = vmatpush1.msra.mxu0 %v451
  %453 = vmatprep.subr.mxu0 0.0
  %v454 = vand.u32 %v27, 4294901760
  %455 = vmatpush1.msra.mxu0 %v454
  %456 = vmatprep.subr.mxu0 0.0
  %v457 = vand.u32 %v44, 4294901760
  %458 = vmatpush1.msra.mxu0 %v457
  %459 = vmatprep.subr.mxu0 0.0
  %460 = vmatpush1.msra.mxu0 0.0
  %461 = vmatprep.subr.mxu0 0.0
  %462 = vmatpush1.msra.mxu0 0.0
  %463 = vmatprep.subr.mxu0 0.0
  %464 = vmatpush1.msra.mxu0 0.0
  %465 = vmatprep.subr.mxu0 0.0
  %466 = vmatpush1.msra.mxu0 0.0
  %467 = vmatprep.subr.mxu0 0.0
  %468 = vmatpush1.msra.mxu0 0.0
  %469 = vmatprep.subr.mxu0 0.0
  %470 = vmatpush1.msra.mxu0 0.0
  %471 = vmatprep.subr.mxu0 0.0
  %472 = vmatpush1.msra.mxu0 0.0
  %473 = vmatprep.subr.mxu0 0.0
  %474 = vmatpush1.msra.mxu0 0.0
  %475 = vmatprep.subr.mxu0 0.0
  %476 = vmatpush1.msra.mxu0 0.0
  %477 = vmatprep.subr.mxu0 0.0
  %478 = vmatpush1.msra.mxu0 0.0
  %479 = vmatprep.subr.mxu0 0.0
  %480 = vmatpush1.msra.mxu0 0.0
  %481 = vmatprep.subr.mxu0 0.0
  %482 = vmatpush1.msra.mxu0 0.0
  %483 = vmatprep.subr.mxu0 0.0
  %484 = vmatpush1.msra.mxu0 0.0
  %485 = vmatprep.subr.mxu0 0.0
  %486 = vmatpush1.msra.mxu0 0.0
  %487 = vmatprep.subr.mxu0 0.0
  %488 = vmatpush1.msra.mxu0 0.0
  %v489 = vand.u32 %v40, 4294901760
  %v490 = vsub.f32 %v40, %v489
  %v491 = vand.u32 %v490, 4294901760
  %492 = vmatprep.mubr.f32.mxu0 %v491
  %v493 = vand.u32 %v36, 4294901760
  %v494 = vsub.f32 %v36, %v493
  %v495 = vand.u32 %v494, 4294901760
  %496 = vmatmul.mubr.f32.gmra.mrb[0].mxu0 %v495
  %v497 = vpop.f32.mrb[0].mxu0
  %v498 = vadd.f32 %v405, %v497
  %v499 = vpop.f32.mrb[0].mxu0
  %500 = vdwg.mxu0
  %501 = vmatprep.subr.mxu0 0.0
  %v502 = vand.u32 %v12, 4294901760
  %v503 = vsub.f32 %v12, %v502
  %v504 = vand.u32 %v503, 4294901760
  %505 = vmatpush1.msra.mxu0 %v504
  %506 = vmatprep.subr.mxu0 0.0
  %v507 = vand.u32 %v13, 4294901760
  %v508 = vsub.f32 %v13, %v507
  %v509 = vand.u32 %v508, 4294901760
  %510 = vmatpush1.msra.mxu0 %v509
  %511 = vmatprep.subr.mxu0 0.0
  %v512 = vand.u32 %v14, 4294901760
  %v513 = vsub.f32 %v14, %v512
  %v514 = vand.u32 %v513, 4294901760
  %515 = vmatpush1.msra.mxu0 %v514
  %516 = vmatprep.subr.mxu0 0.0
  %v517 = vand.u32 %v15, 4294901760
  %v518 = vsub.f32 %v15, %v517
  %v519 = vand.u32 %v518, 4294901760
  %520 = vmatpush1.msra.mxu0 %v519
  %521 = vmatprep.subr.mxu0 0.0
  %v522 = vand.u32 %v16, 4294901760
  %v523 = vsub.f32 %v16, %v522
  %v524 = vand.u32 %v523, 4294901760
  %525 = vmatpush1.msra.mxu0 %v524
  %526 = vmatprep.subr.mxu0 0.0
  %v527 = vand.u32 %v17, 4294901760
  %v528 = vsub.f32 %v17, %v527
  %v529 = vand.u32 %v528, 4294901760
  %530 = vmatpush1.msra.mxu0 %v529
  %531 = vmatprep.subr.mxu0 0.0
  %v532 = vand.u32 %v18, 4294901760
  %v533 = vsub.f32 %v18, %v532
  %v534 = vand.u32 %v533, 4294901760
  %535 = vmatpush1.msra.mxu0 %v534
  %536 = vmatprep.subr.mxu0 0.0
  %v537 = vand.u32 %v19, 4294901760
  %v538 = vsub.f32 %v19, %v537
  %v539 = vand.u32 %v538, 4294901760
  %540 = vmatpush1.msra.mxu0 %v539
  %541 = vmatprep.subr.mxu0 0.0
  %v542 = vand.u32 %v20, 4294901760
  %v543 = vsub.f32 %v20, %v542
  %v544 = vand.u32 %v543, 4294901760
  %545 = vmatpush1.msra.mxu0 %v544
  %546 = vmatprep.subr.mxu0 0.0
  %v547 = vand.u32 %v21, 4294901760
  %v548 = vsub.f32 %v21, %v547
  %v549 = vand.u32 %v548, 4294901760
  %550 = vmatpush1.msra.mxu0 %v549
  %551 = vmatprep.subr.mxu0 0.0
  %v552 = vand.u32 %v22, 4294901760
  %v553 = vsub.f32 %v22, %v552
  %v554 = vand.u32 %v553, 4294901760
  %555 = vmatpush1.msra.mxu0 %v554
  %556 = vmatprep.subr.mxu0 0.0
  %v557 = vand.u32 %v23, 4294901760
  %v558 = vsub.f32 %v23, %v557
  %v559 = vand.u32 %v558, 4294901760
  %560 = vmatpush1.msra.mxu0 %v559
  %561 = vmatprep.subr.mxu0 0.0
  %v562 = vand.u32 %v24, 4294901760
  %v563 = vsub.f32 %v24, %v562
  %v564 = vand.u32 %v563, 4294901760
  %565 = vmatpush1.msra.mxu0 %v564
  %566 = vmatprep.subr.mxu0 0.0
  %v567 = vand.u32 %v25, 4294901760
  %v568 = vsub.f32 %v25, %v567
  %v569 = vand.u32 %v568, 4294901760
  %570 = vmatpush1.msra.mxu0 %v569
  %571 = vmatprep.subr.mxu0 0.0
  %v572 = vand.u32 %v26, 4294901760
  %v573 = vsub.f32 %v26, %v572
  %v574 = vand.u32 %v573, 4294901760
  %575 = vmatpush1.msra.mxu0 %v574
  %576 = vmatprep.subr.mxu0 0.0
  %v577 = vand.u32 %v27, 4294901760
  %v578 = vsub.f32 %v27, %v577
  %v579 = vand.u32 %v578, 4294901760
  %580 = vmatpush1.msra.mxu0 %v579
  %581 = vmatprep.subr.mxu0 0.0
  %v582 = vand.u32 %v44, 4294901760
  %v583 = vsub.f32 %v44, %v582
  %v584 = vand.u32 %v583, 4294901760
  %585 = vmatpush1.msra.mxu0 %v584
  %586 = vmatprep.subr.mxu0 0.0
  %587 = vmatpush1.msra.mxu0 0.0
  %588 = vmatprep.subr.mxu0 0.0
  %589 = vmatpush1.msra.mxu0 0.0
  %590 = vmatprep.subr.mxu0 0.0
  %591 = vmatpush1.msra.mxu0 0.0
  %592 = vmatprep.subr.mxu0 0.0
  %593 = vmatpush1.msra.mxu0 0.0
  %594 = vmatprep.subr.mxu0 0.0
  %595 = vmatpush1.msra.mxu0 0.0
  %596 = vmatprep.subr.mxu0 0.0
  %597 = vmatpush1.msra.mxu0 0.0
  %598 = vmatprep.subr.mxu0 0.0
  %599 = vmatpush1.msra.mxu0 0.0
  %600 = vmatprep.subr.mxu0 0.0
  %601 = vmatpush1.msra.mxu0 0.0
  %602 = vmatprep.subr.mxu0 0.0
  %603 = vmatpush1.msra.mxu0 0.0
  %604 = vmatprep.subr.mxu0 0.0
  %605 = vmatpush1.msra.mxu0 0.0
  %606 = vmatprep.subr.mxu0 0.0
  %607 = vmatpush1.msra.mxu0 0.0
  %608 = vmatprep.subr.mxu0 0.0
  %609 = vmatpush1.msra.mxu0 0.0
  %610 = vmatprep.subr.mxu0 0.0
  %611 = vmatpush1.msra.mxu0 0.0
  %612 = vmatprep.subr.mxu0 0.0
  %613 = vmatpush1.msra.mxu0 0.0
  %614 = vmatprep.subr.mxu0 0.0
  %615 = vmatpush1.msra.mxu0 0.0
  %v616 = vand.u32 %v40, 4294901760
  %617 = vmatprep.mubr.f32.mxu0 %v616
  %v618 = vand.u32 %v36, 4294901760
  %619 = vmatmul.mubr.f32.gmra.mrb[0].mxu0 %v618
  %v620 = vpop.f32.mrb[0].mxu0
  %v621 = vadd.f32 %v498, %v620
  %v622 = vpop.f32.mrb[0].mxu0
  %623 = vdwg.mxu0
  %624 = vmatprep.subr.mxu0 0.0
  %v625 = vand.u32 %v12, 4294901760
  %626 = vmatpush1.msra.mxu0 %v625
  %627 = vmatprep.subr.mxu0 0.0
  %v628 = vand.u32 %v13, 4294901760
  %629 = vmatpush1.msra.mxu0 %v628
  %630 = vmatprep.subr.mxu0 0.0
  %v631 = vand.u32 %v14, 4294901760
  %632 = vmatpush1.msra.mxu0 %v631
  %633 = vmatprep.subr.mxu0 0.0
  %v634 = vand.u32 %v15, 4294901760
  %635 = vmatpush1.msra.mxu0 %v634
  %636 = vmatprep.subr.mxu0 0.0
  %v637 = vand.u32 %v16, 4294901760
  %638 = vmatpush1.msra.mxu0 %v637
  %639 = vmatprep.subr.mxu0 0.0
  %v640 = vand.u32 %v17, 4294901760
  %641 = vmatpush1.msra.mxu0 %v640
  %642 = vmatprep.subr.mxu0 0.0
  %v643 = vand.u32 %v18, 4294901760
  %644 = vmatpush1.msra.mxu0 %v643
  %645 = vmatprep.subr.mxu0 0.0
  %v646 = vand.u32 %v19, 4294901760
  %647 = vmatpush1.msra.mxu0 %v646
  %648 = vmatprep.subr.mxu0 0.0
  %v649 = vand.u32 %v20, 4294901760
  %650 = vmatpush1.msra.mxu0 %v649
  %651 = vmatprep.subr.mxu0 0.0
  %v652 = vand.u32 %v21, 4294901760
  %653 = vmatpush1.msra.mxu0 %v652
  %654 = vmatprep.subr.mxu0 0.0
  %v655 = vand.u32 %v22, 4294901760
  %656 = vmatpush1.msra.mxu0 %v655
  %657 = vmatprep.subr.mxu0 0.0
  %v658 = vand.u32 %v23, 4294901760
  %659 = vmatpush1.msra.mxu0 %v658
  %660 = vmatprep.subr.mxu0 0.0
  %v661 = vand.u32 %v24, 4294901760
  %662 = vmatpush1.msra.mxu0 %v661
  %663 = vmatprep.subr.mxu0 0.0
  %v664 = vand.u32 %v25, 4294901760
  %665 = vmatpush1.msra.mxu0 %v664
  %666 = vmatprep.subr.mxu0 0.0
  %v667 = vand.u32 %v26, 4294901760
  %668 = vmatpush1.msra.mxu0 %v667
  %669 = vmatprep.subr.mxu0 0.0
  %v670 = vand.u32 %v27, 4294901760
  %671 = vmatpush1.msra.mxu0 %v670
  %672 = vmatprep.subr.mxu0 0.0
  %v673 = vand.u32 %v44, 4294901760
  %674 = vmatpush1.msra.mxu0 %v673
  %675 = vmatprep.subr.mxu0 0.0
  %676 = vmatpush1.msra.mxu0 0.0
  %677 = vmatprep.subr.mxu0 0.0
  %678 = vmatpush1.msra.mxu0 0.0
  %679 = vmatprep.subr.mxu0 0.0
  %680 = vmatpush1.msra.mxu0 0.0
  %681 = vmatprep.subr.mxu0 0.0
  %682 = vmatpush1.msra.mxu0 0.0
  %683 = vmatprep.subr.mxu0 0.0
  %684 = vmatpush1.msra.mxu0 0.0
  %685 = vmatprep.subr.mxu0 0.0
  %686 = vmatpush1.msra.mxu0 0.0
  %687 = vmatprep.subr.mxu0 0.0
  %688 = vmatpush1.msra.mxu0 0.0
  %689 = vmatprep.subr.mxu0 0.0
  %690 = vmatpush1.msra.mxu0 0.0
  %691 = vmatprep.subr.mxu0 0.0
  %692 = vmatpush1.msra.mxu0 0.0
  %693 = vmatprep.subr.mxu0 0.0
  %694 = vmatpush1.msra.mxu0 0.0
  %695 = vmatprep.subr.mxu0 0.0
  %696 = vmatpush1.msra.mxu0 0.0
  %697 = vmatprep.subr.mxu0 0.0
  %698 = vmatpush1.msra.mxu0 0.0
  %699 = vmatprep.subr.mxu0 0.0
  %700 = vmatpush1.msra.mxu0 0.0
  %701 = vmatprep.subr.mxu0 0.0
  %702 = vmatpush1.msra.mxu0 0.0
  %703 = vmatprep.subr.mxu0 0.0
  %704 = vmatpush1.msra.mxu0 0.0
  %v705 = vand.u32 %v40, 4294901760
  %706 = vmatprep.mubr.f32.mxu0 %v705
  %v707 = vand.u32 %v36, 4294901760
  %708 = vmatmul.mubr.f32.gmra.mrb[0].mxu0 %v707
  %v709 = vpop.f32.mrb[0].mxu0
  %v710 = vadd.f32 %v621, %v709
  %v711 = vpop.f32.mrb[0].mxu0
  %712 = vdwg.mxu0
  %v713 = vand.u32 2147483647, %v710
  %715 = vrot.lane.b32.xlu0 %v713, 123
  %v716 = vpop.permute.xlu0 %715
  %v718 = vadd.f32 %v713, %v716
  %vm719 = vcmask 33792
  %v720 = vsel %vm719, %v718, 0.0
  %721 = vadd.xlane.f32.xlu0 %v720
  %v722 = vpop.xlane.xlu0 %721
  %v723 = vsel %vm42, %v722, 0.0
  %v724 = vrot.slane %v723, 4
  %v725 = vadd.f32 %v723, %v724
  %v726 = vrot.slane %v725, 2
  %v727 = vadd.f32 %v725, %v726
  %v728 = vrot.slane %v727, 1
  %v729 = vadd.f32 %v727, %v728
  %v730 = vmul.f32 %v729, 0.002232143
  %v731 = vmul.f32 %v710, %v710
  %733 = vrot.lane.b32.xlu0 %v731, 123
  %v734 = vpop.permute.xlu0 %733
  %v736 = vadd.f32 %v731, %v734
  %v737 = vrsqrt.pop %v736
  %v738 = vmul.f32 %v736, %v737
  %vm739 = vcmp.eq.f32.partialorder %v736, inf
  %v740 = vsel %vm739, %v736, %v738
  %vm741 = vcmp.eq.f32.partialorder %v736, 0.0
  %v742 = vand.u32 %v736, 2147483648
  %v743 = vsel %vm741, %v742, %v740
  %vm744 = vcmp.eq.f32.partialorder %v710, 32001.0
  %746 = vrot.lane.b32.xlu0 %v710, 10
  %v747 = vpop.permute.xlu0 %746
  %v749 = vsel %vm744, 0.0, %v747
  %750 = vrot.lane.b32.xlu0 %v710, 5
  %v751 = vpop.permute.xlu0 %750
  %v753 = vsel %vm744, 0.0, %v751
  %v754 = vsel %vm744, 0.0, %v710
  %vm755 = vcmask 115792
  %v756 = vsel %vm755, %v710, inf
  %757 = vmin.xlane.f32.xlu0 %v756
  %v758 = vpop.xlane.xlu0 %757
  %vm759 = vcmask 156792
  %v760 = vsel %vm759, %v710, inf
  %761 = vmin.xlane.f32.xlu0 %v760
  %v762 = vpop.xlane.xlu0 %761
  %vm763 = vcmask 197792
  %v764 = vsel %vm763, %v710, inf
  %765 = vmin.xlane.f32.xlu0 %v764
  %v766 = vpop.xlane.xlu0 %765
  %v767 = vsel %vm755, %v710, -inf
  %768 = vmax.xlane.f32.xlu0 %v767
  %v769 = vpop.xlane.xlu0 %768
  %v770 = vsel %vm759, %v710, -inf
  %771 = vmax.xlane.f32.xlu0 %v770
  %v772 = vpop.xlane.xlu0 %771
  %v773 = vsel %vm763, %v710, -inf
  %774 = vmax.xlane.f32.xlu0 %v773
  %v775 = vpop.xlane.xlu0 %774
  %vm776 = vcmask 320792
  %v777 = vsel %vm776, %v749, inf
  %778 = vmin.xlane.f32.xlu0 %v777
  %v779 = vpop.xlane.xlu0 %778
  %v780 = vsel %vm776, %v749, -inf
  %781 = vmax.xlane.f32.xlu0 %v780
  %v782 = vpop.xlane.xlu0 %781
  %v783 = vsel %vm776, %v753, -inf
  %784 = vmax.xlane.f32.xlu0 %v783
  %v785 = vpop.xlane.xlu0 %784
  %v786 = vsel %vm776, %v754, -inf
  %787 = vmax.xlane.f32.xlu0 %v786
  %v788 = vpop.xlane.xlu0 %787
  %v789 = vsub.f32 %v769, %v758
  %v790 = vsub.f32 %v772, %v762
  %v791 = vsub.f32 %v775, %v766
  %v792 = vrcp.pop %v789
  %v793 = vmul.f32 1.0, %v792
  %v794 = vsub.f32 %v782, %v779
  %v795 = vrcp.pop %v794
  %v796 = vmul.f32 1.0, %v795
  %v797 = vsub.f32 %v749, %v782
  %v798 = vmul.f32 %v797, %v796
  %v799 = vsub.f32 %v710, %v769
  %v800 = vmul.f32 %v799, %v793
  %802 = vrot.lane.b32.xlu0 %v800, 25
  %v803 = vpop.permute.xlu0 %802
  %v805 = vsub.f32 %v798, %v803
  %v806 = vmul.f32 %v805, %v789
  %v807 = vsub.f32 %v753, %v785
  %v808 = vmul.f32 %v807, %v796
  %v809 = vsub.f32 %v710, %v772
  %v810 = vmul.f32 %v809, %v793
  %812 = vrot.lane.b32.xlu0 %v810, 20
  %v813 = vpop.permute.xlu0 %812
  %v815 = vsub.f32 %v808, %v813
  %v816 = vmul.f32 %v815, %v790
  %v817 = vsub.f32 %v754, %v788
  %v818 = vmul.f32 %v817, %v796
  %v819 = vsub.f32 %v710, %v775
  %v820 = vmul.f32 %v819, %v793
  %822 = vrot.lane.b32.xlu0 %v820, 15
  %v823 = vpop.permute.xlu0 %822
  %v825 = vsub.f32 %v818, %v823
  %v826 = vmul.f32 %v825, %v791
  %v827 = vmul.f32 %v806, %v806
  %v828 = vmul.f32 %v816, %v816
  %v829 = vadd.f32 %v827, %v828
  %v830 = vmul.f32 %v826, %v826
  %v831 = vadd.f32 %v829, %v830
  %833 = vrot.lane.b32.xlu0 %v831, 93
  %v834 = vpop.permute.xlu0 %833
  %v836 = vsel %vm719, %v834, 0.0
  %837 = vadd.xlane.f32.xlu0 %v836
  %v838 = vpop.xlane.xlu0 %837
  %v839 = vsel %vm42, %v838, 0.0
  %v840 = vrot.slane %v839, 4
  %v841 = vadd.f32 %v839, %v840
  %v842 = vrot.slane %v841, 2
  %v843 = vadd.f32 %v841, %v842
  %v844 = vrot.slane %v843, 1
  %v845 = vadd.f32 %v843, %v844
  %v846 = vmul.f32 %v845, 50.0
  %v847 = vrsqrt.pop %v831
  %v848 = vmul.f32 %v831, %v847
  %vm849 = vcmp.eq.f32.partialorder %v831, inf
  %v850 = vsel %vm849, %v831, %v848
  %vm851 = vcmp.eq.f32.partialorder %v831, 0.0
  %v852 = vand.u32 %v831, 2147483648
  %v853 = vsel %vm851, %v852, %v850
  %v854 = vlaneseq
  %v855 = vand.u32 %v854, 127
  %vm856 = vcmp.eq.s32.totalorder %v855, 10
  %vm857 = vcmp.eq.s32.totalorder %v855, 11
  %vm858 = vcmp.eq.s32.totalorder %v855, 12
  %v859 = vadd.f32 %v730, %v846
  %v860 = vsel %vm858, %v859, 0.0
  %v861 = vsel %vm857, %v846, %v860
  %v862 = vsel %vm856, %v730, %v861
  %vm863 = vcmp.eq.s32.totalorder %v855, 0
  %865 = vset.pattern.permute.xlu0 0
  %866 = vperm.xlu0 %865, %v743
  %v867 = vpop.permute.xlu0 %866
  %v869 = vsel %vm863, %v867, %v862
  %vm870 = vcmp.eq.s32.totalorder %v855, 5
  %872 = vset.pattern.permute.xlu0 35
  %873 = vperm.xlu0 %872, %v853
  %v874 = vpop.permute.xlu0 %873
  %v876 = vsel %vm870, %v874, %v869
  %vm877 = vcmp.eq.s32.totalorder %v855, 1
  %878 = vset.pattern.permute.xlu0 1
  %879 = vperm.xlu0 %878, %v743
  %v880 = vpop.permute.xlu0 %879
  %v882 = vsel %vm877, %v880, %v876
  %vm883 = vcmp.eq.s32.totalorder %v855, 6
  %884 = vset.pattern.permute.xlu0 36
  %885 = vperm.xlu0 %884, %v853
  %v886 = vpop.permute.xlu0 %885
  %v888 = vsel %vm883, %v886, %v882
  %vm889 = vcmp.eq.s32.totalorder %v855, 2
  %890 = vset.pattern.permute.xlu0 2
  %891 = vperm.xlu0 %890, %v743
  %v892 = vpop.permute.xlu0 %891
  %v894 = vsel %vm889, %v892, %v888
  %vm895 = vcmp.eq.s32.totalorder %v855, 7
  %896 = vset.pattern.permute.xlu0 37
  %897 = vperm.xlu0 %896, %v853
  %v898 = vpop.permute.xlu0 %897
  %v900 = vsel %vm895, %v898, %v894
  %vm901 = vcmp.eq.s32.totalorder %v855, 3
  %902 = vset.pattern.permute.xlu0 3
  %903 = vperm.xlu0 %902, %v743
  %v904 = vpop.permute.xlu0 %903
  %v906 = vsel %vm901, %v904, %v900
  %vm907 = vcmp.eq.s32.totalorder %v855, 8
  %908 = vset.pattern.permute.xlu0 38
  %909 = vperm.xlu0 %908, %v853
  %v910 = vpop.permute.xlu0 %909
  %v912 = vsel %vm907, %v910, %v906
  %vm913 = vcmp.eq.s32.totalorder %v855, 4
  %914 = vset.pattern.permute.xlu0 4
  %915 = vperm.xlu0 %914, %v743
  %v916 = vpop.permute.xlu0 %915
  %v918 = vsel %vm913, %v916, %v912
  %vm919 = vcmp.eq.s32.totalorder %v855, 9
  %920 = vset.pattern.permute.xlu0 39
  %921 = vperm.xlu0 %920, %v853
  %v922 = vpop.permute.xlu0 %921
  %v924 = vsel %vm919, %v922, %v918
  %925 = vst [vmem:[%s2] sm:$0x3] %v924
  // Predicated region
  $region10: #{_forward.1} parent=0 // pred_check
    _
  $region11: #{_forward.1} parent=0 // pred_check_branch
    %927 = sbr.rel (0) target = $region13
  $region12: #{_forward.1} parent=0 // pred_region
    _
  $region13: #{_forward.1} parent=0 // pred_fallthru
    _
  // Predicated region
  $region14: #{_forward.1} parent=0 // pred_check
    _
  $region15: #{_forward.1} parent=0 // pred_check_branch
    %929 = sbr.rel (0) target = $region17
  $region16: #{_forward.1} parent=0 // pred_region
    _
  $region17: #{_forward.1} parent=0 // pred_fallthru
    _

</llo_original>
